<compile_context>
chip_gen: v5e
topology: v5e:2x2
jax: 0.10.0
libtpu: 0.0.40
codegen_flags: <defaults>
</compile_context>

<pallas_src>
import functools

import jax
import jax.numpy as jnp
from jax import lax
from jax.experimental import pallas as pl
from jax.experimental.pallas import tpu as pltpu

_EPS = 1e-6


def _ce_dice_kernel(x_ref, t_ref, w_ref, out_ref,
                    inter_ref, psum_ref, cnt_ref, nll_ref, *, masked):
    # x_ref: (B, C, T)  f32/bf16 logits tile
    # t_ref: (B, 1, T)  i32 class ids (pad pixels carry class id == C)
    # w_ref: (1, C)     f32 class weights (sum to 1)
    # out_ref: (1, 1)   f32 scalar loss (SMEM)
    # scratch: four (B, C) f32 accumulators (VMEM), resident across the grid.
    step = pl.program_id(0)
    last = pl.num_programs(0) - 1
    B, C, T = x_ref.shape

    @pl.when(step == 0)
    def _init():
        inter_ref[...] = jnp.zeros_like(inter_ref)
        psum_ref[...] = jnp.zeros_like(psum_ref)
        cnt_ref[...] = jnp.zeros_like(cnt_ref)
        nll_ref[...] = jnp.zeros_like(nll_ref)
        out_ref[0, 0] = 0.0

    x = x_ref[...]
    if x.dtype != jnp.float32:          # bf16 logits: upcast once, math in f32
        x = x.astype(jnp.float32)
    t = t_ref[...]                      # (B, 1, T) int32

    # log-sum-exp / softmax over the class axis (axis=1)
    m = jnp.max(x, axis=1, keepdims=True)                  # (B, 1, T)
    xm = x - m                                             # (B, C, T)
    e = jnp.exp(xm)                                        # (B, C, T)  EUP
    ssum = jnp.sum(e, axis=1, keepdims=True)               # (B, 1, T)
    inv = pl.reciprocal(ssum, approx=True)                 # EUP, frees VALU
    soft = e * inv                                         # (B, C, T)
    logz = jnp.log(ssum)                                   # (B, 1, T)  EUP

    # one-hot of the target along the class axis (cheap iota, per-tile)
    cls = lax.broadcasted_iota(jnp.int32, (1, C, T), 1)
    onehot = (cls == t).astype(jnp.float32)                # (B, C, T)

    if masked:
        # pad pixels were written with class id == C -> onehot already 0 there;
        # only the raw softmax sum needs explicit masking.
        valid = (t < C).astype(jnp.float32)                # (B, 1, T)
        soft_v = soft * valid
    else:
        soft_v = soft

    # per-(batch, class) partial reductions over this spatial tile
    inter_ref[...] += jnp.sum(soft_v * onehot, axis=2)     # (B, C)
    psum_ref[...] += jnp.sum(soft_v, axis=2)               # (B, C)
    cnt_ref[...] += jnp.sum(onehot, axis=2)                # (B, C)
    nll_ref[...] += jnp.sum(onehot * (logz - xm), axis=2)  # (B, C)

    @pl.when(step == last)
    def _finalize():
        w = w_ref[...]                                     # (1, C)
        inter = inter_ref[...]                             # (B, C)
        card = psum_ref[...] + cnt_ref[...]                # (B, C)
        dice = 2.0 * inter / (card + _EPS)                 # exact divide (tiny)
        dice_w = jnp.sum(dice * w, axis=1, keepdims=True)  # (B, 1)
        dice_loss = jnp.sum(1.0 - dice_w) / B
        ce_num = jnp.sum(nll_ref[...] * w)                 # weighted NLL sum
        ce_den = jnp.sum(cnt_ref[...] * w)                 # total pixel weight
        out_ref[0, 0] = dice_loss + ce_num / ce_den


def _round_up(a, b):
    return ((a + b - 1) // b) * b


def _plan_tiles(HW, B, C, itemsize, tile_hw):
    """Pick a lane-dense tile (multiple of 128) and the padded HW extent."""
    if tile_hw is not None:
        assert tile_hw == HW or tile_hw % 128 == 0, (HW, tile_hw)
        tile = tile_hw
    else:
        budget_bytes = 8 * 1024 * 1024                     # per logits block
        tile_max = max(128, (budget_bytes // (B * C * itemsize)) // 128 * 128)
        if HW % 128 == 0:
            # largest multiple-of-128 divisor of HW under the VMEM budget
            t = min(HW, tile_max)
            while t >= 128 and HW % t != 0:
                t -= 128
            tile = t if t >= 128 else 128
        else:
            tile = min(tile_max, _round_up(HW, 128))
    hw_pad = _round_up(HW, tile)
    return tile, hw_pad


def ce_dice_loss(x, target, weights, *, tile_hw=None):
    """x: (B, C, H, W) f32/bf16 logits, target: (B, H, W) int class ids,
    weights: (1, C) f32 summing to 1.  Returns scalar loss (f32)."""
    B, C, H, W = x.shape
    HW = H * W

    x3 = x.reshape(B, C, HW)
    if x3.dtype not in (jnp.float32, jnp.bfloat16):
        x3 = x3.astype(jnp.float32)
    t3 = target.reshape(B, 1, HW)
    if t3.dtype != jnp.int32:
        t3 = t3.astype(jnp.int32)
    w2 = weights.reshape(1, C)
    if w2.dtype != jnp.float32:
        w2 = w2.astype(jnp.float32)

    tile, hw_pad = _plan_tiles(HW, B, C, x3.dtype.itemsize, tile_hw)
    masked = hw_pad != HW
    if masked:
        pad = hw_pad - HW
        # pad logits with 0 (finite, masked out) and targets with class C so
        # the in-kernel one-hot is identically zero at pad pixels.
        x3 = jnp.pad(x3, ((0, 0), (0, 0), (0, pad)))
        t3 = jnp.pad(t3, ((0, 0), (0, 0), (0, pad)), constant_values=C)
    n_steps = hw_pad // tile

    kernel = functools.partial(_ce_dice_kernel, masked=masked)

    out = pl.pallas_call(
        kernel,
        out_shape=jax.ShapeDtypeStruct((1, 1), jnp.float32),
        grid=(n_steps,),
        in_specs=[
            pl.BlockSpec((B, C, tile), lambda i: (0, 0, i)),
            pl.BlockSpec((B, 1, tile), lambda i: (0, 0, i)),
            pl.BlockSpec((1, C), lambda i: (0, 0)),
        ],
        out_specs=pl.BlockSpec((1, 1), lambda i: (0, 0),
                               memory_space=pltpu.MemorySpace.SMEM),
        scratch_shapes=[
            pltpu.VMEM((B, C), jnp.float32),   # inter
            pltpu.VMEM((B, C), jnp.float32),   # sum(softmax)
            pltpu.VMEM((B, C), jnp.float32),   # pixel count per class
            pltpu.VMEM((B, C), jnp.float32),   # un-weighted NLL per class
        ],
        compiler_params=pltpu.CompilerParams(
            dimension_semantics=("arbitrary",),
            vmem_limit_bytes=48 * 1024 * 1024,
        ),
    )(x3, t3, w2)
    return out[0, 0]


def _reference_loss(x, target, weights):
    """Pure-JAX reference mirroring the PyTorch module's forward."""
    B, C, H, W = x.shape
    logp = jax.nn.log_softmax(x, axis=1)
    soft = jnp.exp(logp)
    onehot = jax.nn.one_hot(target, C, axis=1, dtype=x.dtype)   # (B,C,H,W)
    nll = -jnp.sum(logp * onehot, axis=1)                       # (B,H,W)
    w1d = weights.reshape(C)
    w_pix = w1d[target]                                         # (B,H,W)
    ce = jnp.sum(w_pix * nll) / jnp.sum(w_pix)
    inter = jnp.sum(soft * onehot, axis=(2, 3))                 # (B,C)
    card = jnp.sum(soft + onehot, axis=(2, 3))                  # (B,C)
    dice = 2.0 * inter / (card + _EPS)
    dice_w = jnp.sum(dice * weights.reshape(1, C), axis=1)      # (B,)
    return jnp.mean(1.0 - dice_w) + ce


if __name__ == "__main__":
    key = jax.random.PRNGKey(0)
    kx, kt, kx2, kt2 = jax.random.split(key, 4)

    B, C, H, W = 2, 4, 16, 16
    weights = jnp.array([[0.1, 0.2, 0.3, 0.4]], dtype=jnp.float32)

    # Test 1: aligned spatial dim (HW = 256), tile_hw=128 -> grid=(2,) so the
    # accumulate/finalize path across grid steps is exercised.
    x = jax.random.normal(kx, (B, C, H, W), dtype=jnp.float32)
    target = jax.random.randint(kt, (B, H, W), 0, C, dtype=jnp.int32)
    loss = jax.block_until_ready(ce_dice_loss(x, target, weights, tile_hw=128))
    ref = jax.block_until_ready(_reference_loss(x, target, weights))
    # approx reciprocal in the softmax normalization perturbs dice by ~1e-3.
    assert jnp.abs(loss - ref) < 2e-3, (loss, ref)

    # Test 2: ragged spatial dim (HW = 100) exercises the padded/masked path.
    H2 = W2 = 10
    x2 = jax.random.normal(kx2, (B, C, H2, W2), dtype=jnp.float32)
    t2 = jax.random.randint(kt2, (B, H2, W2), 0, C, dtype=jnp.int32)
    loss2 = jax.block_until_ready(ce_dice_loss(x2, t2, weights))
    ref2 = jax.block_until_ready(_reference_loss(x2, t2, weights))
    assert jnp.abs(loss2 - ref2) < 5e-3, (loss2, ref2)

    print("KERNEL_OK")
</pallas_src>

<mosaic_0001>
module attributes {stable_mosaic.version = 11 : i64} {
  func.func @_ce_dice_kernel(%arg0: i32, %arg1: memref<2x4x128xf32, #tpu.memory_space<vmem>>, %arg2: memref<2x1x128xi32, #tpu.memory_space<vmem>>, %arg3: memref<1x4xf32, #tpu.memory_space<vmem>>, %arg4: memref<1x1xf32, #tpu.memory_space<smem>>, %arg5: memref<2x4xf32, #tpu.memory_space<vmem>>, %arg6: memref<2x4xf32, #tpu.memory_space<vmem>>, %arg7: memref<2x4xf32, #tpu.memory_space<vmem>>, %arg8: memref<2x4xf32, #tpu.memory_space<vmem>>) attributes {dimension_semantics = [#tpu.dimension_semantics<arbitrary>], iteration_bounds = array<i64: 2>, scalar_prefetch = 0 : i64, scratch_operands = 4 : i64, tpu.core_type = #tpu.core_type<tc>, window_params = [{transform_indices = @transform_0, window_bounds = array<i64: 2, 4, 128>}, {transform_indices = @transform_1, window_bounds = array<i64: 2, 1, 128>}, {pipeline_mode = #tpu.pipeline_mode<synchronous>, transform_indices = @transform_2, window_bounds = array<i64: 1, 4>}, {transform_indices = @transform_3, window_bounds = array<i64: 1, 1>}]} {
    %c0_i32 = arith.constant 0 : i32
    %0 = arith.cmpi eq, %arg0, %c0_i32 : i32
    %1 = arith.extui %0 : i1 to i32
    %c0_i32_0 = arith.constant 0 : i32
    %2 = arith.cmpi ne, %1, %c0_i32_0 : i32
    scf.if %2 {
      %cst_28 = arith.constant 0.000000e+00 : f32
      %45 = vector.broadcast %cst_28 : f32 to vector<2x4xf32>
      %c0_29 = arith.constant 0 : index
      %c0_30 = arith.constant 0 : index
      %46 = vector.load %arg5[%c0_29, %c0_30] : memref<2x4xf32, #tpu.memory_space<vmem>>, vector<2x4xf32>
      tpu.vector_store %arg5[%c0_29, %c0_30], %45 {strides = array<i32>} : memref<2x4xf32, #tpu.memory_space<vmem>>, vector<2x4xf32>,
      %cst_31 = arith.constant 0.000000e+00 : f32
      %47 = vector.broadcast %cst_31 : f32 to vector<2x4xf32>
      %c0_32 = arith.constant 0 : index
      %c0_33 = arith.constant 0 : index
      %48 = vector.load %arg6[%c0_32, %c0_33] : memref<2x4xf32, #tpu.memory_space<vmem>>, vector<2x4xf32>
      tpu.vector_store %arg6[%c0_32, %c0_33], %47 {strides = array<i32>} : memref<2x4xf32, #tpu.memory_space<vmem>>, vector<2x4xf32>,
      %cst_34 = arith.constant 0.000000e+00 : f32
      %49 = vector.broadcast %cst_34 : f32 to vector<2x4xf32>
      %c0_35 = arith.constant 0 : index
      %c0_36 = arith.constant 0 : index
      %50 = vector.load %arg7[%c0_35, %c0_36] : memref<2x4xf32, #tpu.memory_space<vmem>>, vector<2x4xf32>
      tpu.vector_store %arg7[%c0_35, %c0_36], %49 {strides = array<i32>} : memref<2x4xf32, #tpu.memory_space<vmem>>, vector<2x4xf32>,
      %cst_37 = arith.constant 0.000000e+00 : f32
      %51 = vector.broadcast %cst_37 : f32 to vector<2x4xf32>
      %c0_38 = arith.constant 0 : index
      %c0_39 = arith.constant 0 : index
      %52 = vector.load %arg8[%c0_38, %c0_39] : memref<2x4xf32, #tpu.memory_space<vmem>>, vector<2x4xf32>
      tpu.vector_store %arg8[%c0_38, %c0_39], %51 {strides = array<i32>} : memref<2x4xf32, #tpu.memory_space<vmem>>, vector<2x4xf32>,
      %cst_40 = arith.constant 0.000000e+00 : f32
      %c0_41 = arith.constant 0 : index
      %c0_42 = arith.constant 0 : index
      %53 = memref.load %arg4[%c0_41, %c0_42] : memref<1x1xf32, #tpu.memory_space<smem>>
      memref.store %cst_40, %arg4[%c0_41, %c0_42] : memref<1x1xf32, #tpu.memory_space<smem>>
    } else {
    }
    %c0 = arith.constant 0 : index
    %c0_1 = arith.constant 0 : index
    %c0_2 = arith.constant 0 : index
    %3 = vector.load %arg1[%c0, %c0_1, %c0_2] : memref<2x4x128xf32, #tpu.memory_space<vmem>>, vector<2x4x128xf32>
    %c0_3 = arith.constant 0 : index
    %c0_4 = arith.constant 0 : index
    %c0_5 = arith.constant 0 : index
    %4 = vector.load %arg2[%c0_3, %c0_4, %c0_5] : memref<2x1x128xi32, #tpu.memory_space<vmem>>, vector<2x1x128xi32>
    %cst = arith.constant dense<0xFF800000> : vector<2x128xf32>
    %5 = vector.multi_reduction <maximumf>, %3, %cst [1] : vector<2x4x128xf32> to vector<2x128xf32>
    %6 = vector.shape_cast %5 : vector<2x128xf32> to vector<2x1x128xf32>
    %7 = vector.broadcast %6 : vector<2x1x128xf32> to vector<2x4x128xf32>
    %8 = arith.subf %3, %7 : vector<2x4x128xf32>
    %9 = math.exp %8 : vector<2x4x128xf32>
    %cst_6 = arith.constant dense<0.000000e+00> : vector<2x128xf32>
    %10 = vector.multi_reduction <add>, %9, %cst_6 [1] : vector<2x4x128xf32> to vector<2x128xf32>
    %11 = vector.shape_cast %10 : vector<2x128xf32> to vector<2x1x128xf32>
    %12 = tpu.reciprocal %11 {approx = true} : vector<2x1x128xf32> -> vector<2x1x128xf32>
    %13 = vector.broadcast %12 : vector<2x1x128xf32> to vector<2x4x128xf32>
    %14 = arith.mulf %9, %13 : vector<2x4x128xf32>
    %15 = math.log %11 : vector<2x1x128xf32>
    %16 = tpu.iota {dimensions = array<i32: 1>} : vector<1x4x128xi32>
    %17 = vector.broadcast %16 : vector<1x4x128xi32> to vector<2x4x128xi32>
    %18 = vector.broadcast %4 : vector<2x1x128xi32> to vector<2x4x128xi32>
    %19 = arith.cmpi eq, %17, %18 : vector<2x4x128xi32>
    %20 = arith.extui %19 : vector<2x4x128xi1> to vector<2x4x128xi32>
    %21 = arith.sitofp %20 : vector<2x4x128xi32> to vector<2x4x128xf32>
    %c0_7 = arith.constant 0 : index
    %c0_8 = arith.constant 0 : index
    %22 = vector.load %arg5[%c0_7, %c0_8] : memref<2x4xf32, #tpu.memory_space<vmem>>, vector<2x4xf32>
    %23 = arith.mulf %14, %21 : vector<2x4x128xf32>
    %cst_9 = arith.constant dense<0.000000e+00> : vector<2x4xf32>
    %24 = vector.multi_reduction <add>, %23, %cst_9 [2] : vector<2x4x128xf32> to vector<2x4xf32>
    %25 = arith.addf %22, %24 : vector<2x4xf32>
    %c0_10 = arith.constant 0 : index
    %c0_11 = arith.constant 0 : index
    %26 = vector.load %arg5[%c0_10, %c0_11] : memref<2x4xf32, #tpu.memory_space<vmem>>, vector<2x4xf32>
    tpu.vector_store %arg5[%c0_10, %c0_11], %25 {strides = array<i32>} : memref<2x4xf32, #tpu.memory_space<vmem>>, vector<2x4xf32>,
    %c0_12 = arith.constant 0 : index
    %c0_13 = arith.constant 0 : index
    %27 = vector.load %arg6[%c0_12, %c0_13] : memref<2x4xf32, #tpu.memory_space<vmem>>, vector<2x4xf32>
    %cst_14 = arith.constant dense<0.000000e+00> : vector<2x4xf32>
    %28 = vector.multi_reduction <add>, %14, %cst_14 [2] : vector<2x4x128xf32> to vector<2x4xf32>
    %29 = arith.addf %27, %28 : vector<2x4xf32>
    %c0_15 = arith.constant 0 : index
    %c0_16 = arith.constant 0 : index
    %30 = vector.load %arg6[%c0_15, %c0_16] : memref<2x4xf32, #tpu.memory_space<vmem>>, vector<2x4xf32>
    tpu.vector_store %arg6[%c0_15, %c0_16], %29 {strides = array<i32>} : memref<2x4xf32, #tpu.memory_space<vmem>>, vector<2x4xf32>,
    %c0_17 = arith.constant 0 : index
    %c0_18 = arith.constant 0 : index
    %31 = vector.load %arg7[%c0_17, %c0_18] : memref<2x4xf32, #tpu.memory_space<vmem>>, vector<2x4xf32>
    %cst_19 = arith.constant dense<0.000000e+00> : vector<2x4xf32>
    %32 = vector.multi_reduction <add>, %21, %cst_19 [2] : vector<2x4x128xf32> to vector<2x4xf32>
    %33 = arith.addf %31, %32 : vector<2x4xf32>
    %c0_20 = arith.constant 0 : index
    %c0_21 = arith.constant 0 : index
    %34 = vector.load %arg7[%c0_20, %c0_21] : memref<2x4xf32, #tpu.memory_space<vmem>>, vector<2x4xf32>
    tpu.vector_store %arg7[%c0_20, %c0_21], %33 {strides = array<i32>} : memref<2x4xf32, #tpu.memory_space<vmem>>, vector<2x4xf32>,
    %c0_22 = arith.constant 0 : index
    %c0_23 = arith.constant 0 : index
    %35 = vector.load %arg8[%c0_22, %c0_23] : memref<2x4xf32, #tpu.memory_space<vmem>>, vector<2x4xf32>
    %36 = vector.broadcast %15 : vector<2x1x128xf32> to vector<2x4x128xf32>
    %37 = arith.subf %36, %8 : vector<2x4x128xf32>
    %38 = arith.mulf %21, %37 : vector<2x4x128xf32>
    %cst_24 = arith.constant dense<0.000000e+00> : vector<2x4xf32>
    %39 = vector.multi_reduction <add>, %38, %cst_24 [2] : vector<2x4x128xf32> to vector<2x4xf32>
    %40 = arith.addf %35, %39 : vector<2x4xf32>
    %c0_25 = arith.constant 0 : index
    %c0_26 = arith.constant 0 : index
    %41 = vector.load %arg8[%c0_25, %c0_26] : memref<2x4xf32, #tpu.memory_space<vmem>>, vector<2x4xf32>
    tpu.vector_store %arg8[%c0_25, %c0_26], %40 {strides = array<i32>} : memref<2x4xf32, #tpu.memory_space<vmem>>, vector<2x4xf32>,
    %c1_i32 = arith.constant 1 : i32
    %42 = arith.cmpi eq, %arg0, %c1_i32 : i32
    %43 = arith.extui %42 : i1 to i32
    %c0_i32_27 = arith.constant 0 : i32
    %44 = arith.cmpi ne, %43, %c0_i32_27 : i32
    scf.if %44 {
      %c0_28 = arith.constant 0 : index
      %c0_29 = arith.constant 0 : index
      %45 = vector.load %arg3[%c0_28, %c0_29] : memref<1x4xf32, #tpu.memory_space<vmem>>, vector<1x4xf32>
      %c0_30 = arith.constant 0 : index
      %c0_31 = arith.constant 0 : index
      %46 = vector.load %arg5[%c0_30, %c0_31] : memref<2x4xf32, #tpu.memory_space<vmem>>, vector<2x4xf32>
      %c0_32 = arith.constant 0 : index
      %c0_33 = arith.constant 0 : index
      %47 = vector.load %arg6[%c0_32, %c0_33] : memref<2x4xf32, #tpu.memory_space<vmem>>, vector<2x4xf32>
      %c0_34 = arith.constant 0 : index
      %c0_35 = arith.constant 0 : index
      %48 = vector.load %arg7[%c0_34, %c0_35] : memref<2x4xf32, #tpu.memory_space<vmem>>, vector<2x4xf32>
      %49 = arith.addf %47, %48 : vector<2x4xf32>
      %cst_36 = arith.constant 2.000000e+00 : f32
      %50 = vector.broadcast %cst_36 : f32 to vector<2x4xf32>
      %51 = arith.mulf %50, %46 : vector<2x4xf32>
      %cst_37 = arith.constant 9.99999997E-7 : f32
      %52 = vector.broadcast %cst_37 : f32 to vector<2x4xf32>
      %53 = arith.addf %49, %52 : vector<2x4xf32>
      %54 = arith.divf %51, %53 : vector<2x4xf32>
      %55 = vector.broadcast %45 : vector<1x4xf32> to vector<2x4xf32>
      %56 = arith.mulf %54, %55 : vector<2x4xf32>
      %cst_38 = arith.constant dense<0.000000e+00> : vector<2xf32>
      %57 = vector.multi_reduction <add>, %56, %cst_38 [1] : vector<2x4xf32> to vector<2xf32>
      %58 = vector.shape_cast %57 : vector<2xf32> to vector<2x1xf32>
      %cst_39 = arith.constant 1.000000e+00 : f32
      %59 = vector.broadcast %cst_39 : f32 to vector<2x1xf32>
      %60 = arith.subf %59, %58 : vector<2x1xf32>
      %61 = vector.shape_cast %60 : vector<2x1xf32> to vector<1x2x1xf32>
      %cst_40 = arith.constant dense<0.000000e+00> : vector<1xf32>
      %62 = vector.multi_reduction <add>, %61, %cst_40 [1, 2] : vector<1x2x1xf32> to vector<1xf32>
      %63 = vector.shape_cast %62 : vector<1xf32> to vector<1x1x1xf32>
      %64 = vector.extract %63[0, 0, 0] : f32 from vector<1x1x1xf32>
      %cst_41 = arith.constant 2.000000e+00 : f32
      %65 = arith.divf %64, %cst_41 : f32
      %c0_42 = arith.constant 0 : index
      %c0_43 = arith.constant 0 : index
      %66 = vector.load %arg8[%c0_42, %c0_43] : memref<2x4xf32, #tpu.memory_space<vmem>>, vector<2x4xf32>
      %67 = vector.broadcast %45 : vector<1x4xf32> to vector<2x4xf32>
      %68 = arith.mulf %66, %67 : vector<2x4xf32>
      %69 = vector.shape_cast %68 : vector<2x4xf32> to vector<1x2x4xf32>
      %cst_44 = arith.constant dense<0.000000e+00> : vector<1xf32>
      %70 = vector.multi_reduction <add>, %69, %cst_44 [1, 2] : vector<1x2x4xf32> to vector<1xf32>
      %71 = vector.shape_cast %70 : vector<1xf32> to vector<1x1x1xf32>
      %72 = vector.extract %71[0, 0, 0] : f32 from vector<1x1x1xf32>
      %c0_45 = arith.constant 0 : index
      %c0_46 = arith.constant 0 : index
      %73 = vector.load %arg7[%c0_45, %c0_46] : memref<2x4xf32, #tpu.memory_space<vmem>>, vector<2x4xf32>
      %74 = vector.broadcast %45 : vector<1x4xf32> to vector<2x4xf32>
      %75 = arith.mulf %73, %74 : vector<2x4xf32>
      %76 = vector.shape_cast %75 : vector<2x4xf32> to vector<1x2x4xf32>
      %cst_47 = arith.constant dense<0.000000e+00> : vector<1xf32>
      %77 = vector.multi_reduction <add>, %76, %cst_47 [1, 2] : vector<1x2x4xf32> to vector<1xf32>
      %78 = vector.shape_cast %77 : vector<1xf32> to vector<1x1x1xf32>
      %79 = vector.extract %78[0, 0, 0] : f32 from vector<1x1x1xf32>
      %80 = arith.divf %72, %79 : f32
      %81 = arith.addf %65, %80 : f32
      %c0_48 = arith.constant 0 : index
      %c0_49 = arith.constant 0 : index
      %82 = memref.load %arg4[%c0_48, %c0_49] : memref<1x1xf32, #tpu.memory_space<smem>>
      memref.store %81, %arg4[%c0_48, %c0_49] : memref<1x1xf32, #tpu.memory_space<smem>>
    } else {
    }
    return
  }
  func.func @transform_0(%arg0: i32) -> (i32, i32, i32) {
    %c0_i32 = arith.constant 0 : i32
    %c0_i32_0 = arith.constant 0 : i32
    %c0_i32_1 = arith.constant 0 : i32
    return %c0_i32, %c0_i32_0, %arg0 : i32, i32, i32
  }
  func.func @transform_1(%arg0: i32) -> (i32, i32, i32) {
    %c0_i32 = arith.constant 0 : i32
    %c0_i32_0 = arith.constant 0 : i32
    %c0_i32_1 = arith.constant 0 : i32
    return %c0_i32, %c0_i32_0, %arg0 : i32, i32, i32
  }
  func.func @transform_2(%arg0: i32) -> (i32, i32) {
    %c0_i32 = arith.constant 0 : i32
    %c0_i32_0 = arith.constant 0 : i32
    %c0_i32_1 = arith.constant 0 : i32
    return %c0_i32, %c0_i32_0 : i32, i32
  }
  func.func @transform_3(%arg0: i32) -> (i32, i32) {
    %c0_i32 = arith.constant 0 : i32
    %c0_i32_0 = arith.constant 0 : i32
    %c0_i32_1 = arith.constant 0 : i32
    return %c0_i32, %c0_i32_0 : i32, i32
  }
}

</mosaic_0001>

<llo_original>
// kernel: tpu_custom_call.1
$region0: #{tpu_custom_call.1}
  #allocation0 [shape = 'u32[]', space=smem, size = 0x4, offset = 0x4, fixed_abs, tag = 'smem constant byte address 0x4 - core index']
  #allocation1 [shape = 'u32[72,128]{1,0:T(1,128)}', space=vmem, size = 0x9000, scoped, tag = 'internal scratch']
  #allocation2 [shape = 'f32[2,4]{1,0:T(2,128)}', space=vmem, size = 0x400, scoped, tag = 'scratch operand']
  #allocation3 [shape = 'f32[2,4]{1,0:T(2,128)}', space=vmem, size = 0x400, scoped, tag = 'scratch operand']
  #allocation4 [shape = 'f32[2,4]{1,0:T(2,128)}', space=vmem, size = 0x400, scoped, tag = 'scratch operand']
  #allocation5 [shape = 'f32[2,4]{1,0:T(2,128)}', space=vmem, size = 0x400, scoped, tag = 'scratch operand']
  %s0 = inlined_call_operand.hbm [shape: f32[2,4,256], index: 0, kind: input, shape index: {}]
  %s1 = inlined_call_operand.hbm [shape: s32[2,1,256], index: 1, kind: input, shape index: {}]
  %s2 = inlined_call_operand.vmem [shape: f32[1,4], index: 2, kind: input, shape index: {}]
  %s3 = inlined_call_operand.hbm [shape: f32[1,1], index: 3, kind: output, shape index: {}]
  %s4 = sld [smem:[#allocation0]]
  $region61: #{tpu_custom_call.1} parent=0
    _
  %s6 = ssub.s32 1, %s4
  %s7 = scalar_select 0, %s6, %s4
  $region1: #{tpu_custom_call.1} parent=0
    #allocation6 [shape = 'u8[8192]{0}', space=vmem, size = 0x2000, scoped, tag = 'input window, operand 0']
    #allocation7 [shape = 's32[2]{0}', space=sflag, size = 0x8, scoped, tag = 'scoped memory for tpu_custom_call.1']
    #allocation8 [shape = 's32[2]{0}', space=sflag, size = 0x8, scoped, tag = 'scoped memory for tpu_custom_call.1']
    #allocation9 [shape = 'u8[2048]{0}', space=vmem, size = 0x800, scoped, tag = 'input window, operand 1']
    #allocation10 [shape = 's32[2]{0}', space=sflag, size = 0x8, scoped, tag = 'scoped memory for tpu_custom_call.1']
    #allocation11 [shape = 'u8[512]{0}', space=smem, size = 0x200, scoped, tag = 'output window, operand 0, single buffered']
    %8 = vsyncpa [#allocation7], 0
    %s9 = scalar_lea.sflag [#allocation7], 1
    %10 = vsyncpa %s9, 0
    %11 = vsyncpa [#allocation10], 0
    %s12 = scalar_lea.sflag [#allocation10], 1
    %13 = vsyncpa %s12, 0
    %14 = vsyncpa [#allocation8], 0
    loop: start=0, step=1, limit=4
    $region2: #{tpu_custom_call.1} parent=1 // loop_pre_header
      _
    $region3: #{tpu_custom_call.1} parent=1 // loop_header
      %s16 = sphi 0, %s20
      %p17 = scmp.ge.s32.totalorder %s16, 4
      %s26 = sphi 0, %s28
      %s29 = sphi 0, %s26
      %s30 = sphi 0, %s29
      %s46 = sphi 0, %s30
      %s52 = sphi 0, %s54
      %s55 = sphi 0, %s52
      %s56 = sphi 0, %s55
      %s72 = sphi 0, %s56
      %s76 = sphi 0, %s76
      %s78 = sphi 0, %s76
      %s79 = sphi 0, %s78
      %s93 = sphi 0, %s79
      %s97 = sphi 0, %s97
      %s99 = sphi 0, %s97
      %s100 = sphi 0, %s99
      %s114 = sphi 0, %s100
    $region4: #{tpu_custom_call.1} parent=1 // loop_header_branch
      %19 = sbr.rel (%p17) target = $region8
    $region5: #{tpu_custom_call.1} parent=1 // loop_body
      %s21 = ssub.s32 %s16, 1
      %s22 = ssub.s32 %s16, 2
      %s23 = sadd.s32 %s16, 1
      %s24 = ssub.s32 %s16, %s23
      %p25 = scmp.eq.s32.totalorder %s24, 0
      %s27 = sadd.s32 %s26, 1
      %s28 = scalar_select %p25, %s26, %s27
      %p31 = pneg %p25
      %p32 = scmp.eq.s32.totalorder %s16, 1
      %p33 = por %p31, %p32
      %p34 = scmp.ne.s32.totalorder %s26, %s29
      %p35 = scmp.eq.s32.totalorder %s16, 0
      %p36 = por %p34, %p35
      %p37 = scmp.ne.s32.totalorder %s26, %s29
      %p38 = scmp.eq.s32.totalorder %s21, 1
      %p39 = por %p37, %p38
      %p40 = scmp.ne.s32.totalorder %s29, %s30
      %p41 = scmp.eq.s32.totalorder %s21, 0
      %p42 = por %p40, %p41
      %p43 = scmp.ne.s32.totalorder %s29, %s30
      %p44 = scmp.eq.s32.totalorder %s22, 1
      %p45 = por %p43, %p44
      %p47 = scmp.ne.s32.totalorder %s30, %s46
      %p48 = scmp.eq.s32.totalorder %s22, 0
      %p49 = por %p47, %p48
      %s50 = ssub.s32 %s16, %s23
      %p51 = scmp.eq.s32.totalorder %s50, 0
      %s53 = sadd.s32 %s52, 1
      %s54 = scalar_select %p51, %s52, %s53
      %p57 = pneg %p51
      %p58 = scmp.eq.s32.totalorder %s16, 1
      %p59 = por %p57, %p58
      %p60 = scmp.ne.s32.totalorder %s52, %s55
      %p61 = scmp.eq.s32.totalorder %s16, 0
      %p62 = por %p60, %p61
      %p63 = scmp.ne.s32.totalorder %s52, %s55
      %p64 = scmp.eq.s32.totalorder %s21, 1
      %p65 = por %p63, %p64
      %p66 = scmp.ne.s32.totalorder %s55, %s56
      %p67 = scmp.eq.s32.totalorder %s21, 0
      %p68 = por %p66, %p67
      %p69 = scmp.ne.s32.totalorder %s55, %s56
      %p70 = scmp.eq.s32.totalorder %s22, 1
      %p71 = por %p69, %p70
      %p73 = scmp.ne.s32.totalorder %s56, %s72
      %p74 = scmp.eq.s32.totalorder %s22, 0
      %p75 = por %p73, %p74
      %s77 = sadd.s32 %s76, 1
      %p80 = scmp.eq.s32.totalorder %s16, 1
      %p81 = scmp.ne.s32.totalorder %s76, %s78
      %p82 = scmp.eq.s32.totalorder %s16, 0
      %p83 = por %p81, %p82
      %p84 = scmp.ne.s32.totalorder %s76, %s78
      %p85 = scmp.eq.s32.totalorder %s21, 1
      %p86 = por %p84, %p85
      %p87 = scmp.ne.s32.totalorder %s78, %s79
      %p88 = scmp.eq.s32.totalorder %s21, 0
      %p89 = por %p87, %p88
      %p90 = scmp.ne.s32.totalorder %s78, %s79
      %p91 = scmp.eq.s32.totalorder %s22, 1
      %p92 = por %p90, %p91
      %p94 = scmp.ne.s32.totalorder %s79, %s93
      %p95 = scmp.eq.s32.totalorder %s22, 0
      %p96 = por %p94, %p95
      %s98 = sadd.s32 %s97, 1
      %p101 = scmp.eq.s32.totalorder %s16, 1
      %p102 = scmp.ne.s32.totalorder %s97, %s99
      %p103 = scmp.eq.s32.totalorder %s16, 0
      %p104 = por %p102, %p103
      %p105 = scmp.ne.s32.totalorder %s97, %s99
      %p106 = scmp.eq.s32.totalorder %s21, 1
      %p107 = por %p105, %p106
      %p108 = scmp.ne.s32.totalorder %s99, %s100
      %p109 = scmp.eq.s32.totalorder %s21, 0
      %p110 = por %p108, %p109
      %p111 = scmp.ne.s32.totalorder %s99, %s100
      %p112 = scmp.eq.s32.totalorder %s22, 1
      %p113 = por %p111, %p112
      %p115 = scmp.ne.s32.totalorder %s100, %s114
      %p116 = scmp.eq.s32.totalorder %s22, 0
      %p117 = por %p115, %p116
      %p118 = scmp.le.s32.totalorder 1, %s16
      %p119 = scmp.lt.s32.totalorder %s16, 3
      %p120 = pnand %p118, %p119
      %p121 = pneg %p120
      // Predicated region
      $region9: #{tpu_custom_call.1} parent=5 // pred_check
        _
      $region10: #{tpu_custom_call.1} parent=5 // pred_check_branch
        %123 = sbr.rel (%p120) target = $region12
      $region11: #{tpu_custom_call.1} parent=5 // pred_region
        %s124 = ssub.s32 %s16, 1
        // Predicated region
        $region13: #{tpu_custom_call.1} parent=11 // pred_check
          %p125 = pneg %p89
        $region14: #{tpu_custom_call.1} parent=11 // pred_check_branch
          %127 = sbr.rel (%p125) target = $region16
        $region15: #{tpu_custom_call.1} parent=11 // pred_region
          _
        $region16: #{tpu_custom_call.1} parent=11 // pred_fallthru
          _
      $region12: #{tpu_custom_call.1} parent=5 // pred_fallthru
        _
      %p128 = scmp.lt.s32.totalorder %s16, 2
      // Predicated region
      $region17: #{tpu_custom_call.1} parent=5 // pred_check
        %p129 = pneg %p128
      $region18: #{tpu_custom_call.1} parent=5 // pred_check_branch
        %131 = sbr.rel (%p129) target = $region20
      $region19: #{tpu_custom_call.1} parent=5 // pred_region
        // Predicated region
        $region21: #{tpu_custom_call.1} parent=19 // pred_check
          %p132 = pneg %p36
        $region22: #{tpu_custom_call.1} parent=19 // pred_check_branch
          %134 = sbr.rel (%p132) target = $region24
        $region23: #{tpu_custom_call.1} parent=19 // pred_region
          %s135 = sand.u32 %s26, 1
          %s136 = scalar_lea.sflag [#allocation7], %s135
          %s137 = sand.u32 %s26, 1
          %s138 = smul.addr %s137, 8
          %s139 = scalar_lea.vmem [#allocation6], %s138
          %141 = vsyncadd %s136, 0
          %s142 = smul.addr %s16, 4
          %s143 = scalar_lea.hbm %s0, %s142
          %s144 = sshll.u32 %s143, 4
          %s145 = int_to_ptr.hbm [resolvable:$true] %s144
          %s146 = sshll.u32 %s139, 4
          %s147 = int_to_ptr.vmem [resolvable:$true] %s146
          %152 = dma.hbm_to_vmem [thread:$0]  %s145, 128, %s147, %s136, 128, 64, 4
        $region24: #{tpu_custom_call.1} parent=19 // pred_fallthru
          _
        // Predicated region
        $region25: #{tpu_custom_call.1} parent=19 // pred_check
          %p153 = pneg %p62
        $region26: #{tpu_custom_call.1} parent=19 // pred_check_branch
          %155 = sbr.rel (%p153) target = $region28
        $region27: #{tpu_custom_call.1} parent=19 // pred_region
          %s156 = sand.u32 %s52, 1
          %s157 = scalar_lea.sflag [#allocation10], %s156
          %s158 = sand.u32 %s52, 1
          %s159 = smul.addr %s158, 2
          %s160 = scalar_lea.vmem [#allocation9], %s159
          %162 = vsyncadd %s157, 0
          %s163 = scalar_lea.hbm %s1, %s16
          %s164 = sshll.u32 %s163, 4
          %s165 = int_to_ptr.hbm [resolvable:$true] %s164
          %s166 = sshll.u32 %s160, 4
          %s167 = int_to_ptr.vmem [resolvable:$true] %s166
          %172 = dma.hbm_to_vmem [thread:$0]  %s165, 32, %s167, %s157, 32, 16, 1
        $region28: #{tpu_custom_call.1} parent=19 // pred_fallthru
          _
      $region20: #{tpu_custom_call.1} parent=5 // pred_fallthru
        _
      %p173 = scmp.le.s32.totalorder 1, %s16
      %p174 = scmp.lt.s32.totalorder %s16, 3
      %p175 = pnand %p173, %p174
      %p176 = pneg %p175
      // Predicated region
      $region29: #{tpu_custom_call.1} parent=5 // pred_check
        _
      $region30: #{tpu_custom_call.1} parent=5 // pred_check_branch
        %178 = sbr.rel (%p175) target = $region32
      $region31: #{tpu_custom_call.1} parent=5 // pred_region
        %s179 = ssub.s32 %s16, 1
        %s180 = sand.u32 %s29, 1
        %s181 = scalar_lea.sflag [#allocation7], %s180
        %s182 = sand.u32 %s29, 1
        %s183 = smul.addr %s182, 8
        %s184 = scalar_lea.vmem [#allocation6], %s183
        // Predicated region
        $region33: #{tpu_custom_call.1} parent=31 // pred_check
          %p185 = pneg %p42
        $region34: #{tpu_custom_call.1} parent=31 // pred_check_branch
          %187 = sbr.rel (%p185) target = $region36
        $region35: #{tpu_custom_call.1} parent=31 // pred_region
          %189 = dma.done %s181, 128
        $region36: #{tpu_custom_call.1} parent=31 // pred_fallthru
          _
        %s190 = sand.u32 %s55, 1
        %s191 = scalar_lea.sflag [#allocation10], %s190
        %s192 = sand.u32 %s55, 1
        %s193 = smul.addr %s192, 2
        %s194 = scalar_lea.vmem [#allocation9], %s193
        // Predicated region
        $region37: #{tpu_custom_call.1} parent=31 // pred_check
          %p195 = pneg %p68
        $region38: #{tpu_custom_call.1} parent=31 // pred_check_branch
          %197 = sbr.rel (%p195) target = $region40
        $region39: #{tpu_custom_call.1} parent=31 // pred_region
          %199 = dma.done %s191, 32
        $region40: #{tpu_custom_call.1} parent=31 // pred_fallthru
          _
        %s200 = sand.u32 %s29, 1
        %s201 = scalar_lea.sflag [#allocation7], %s200
        %s202 = sand.u32 %s29, 1
        %s203 = smul.addr %s202, 8
        %s204 = scalar_lea.vmem [#allocation6], %s203
        %p205 = pneg %p42
        %p206 = pneg %p39
        %s207 = sand.u32 %s55, 1
        %s208 = scalar_lea.sflag [#allocation10], %s207
        %s209 = sand.u32 %s55, 1
        %s210 = smul.addr %s209, 2
        %s211 = scalar_lea.vmem [#allocation9], %s210
        %p212 = pneg %p68
        %p213 = pneg %p65
        %p214 = pneg %p89
        %p215 = pneg %p86
        %p216 = pneg %p110
        %p217 = pneg %p107
        %p218 = scmp.eq.s32.totalorder %s21, 0
        // Predicated region
        $region41: #{tpu_custom_call.1} parent=31 // pred_check
          %p219 = pneg %p218
        $region42: #{tpu_custom_call.1} parent=31 // pred_check_branch
          %221 = sbr.rel (%p219) target = $region44
        $region43: #{tpu_custom_call.1} parent=31 // pred_region
          %vm222 = vcmask 25600
          %223 = vst.msk [vmem:[#allocation2] sm:$0x3] %vm222, 0.0
          %224 = vst.msk [vmem:[#allocation3] sm:$0x3] %vm222, 0.0
          %225 = vst.msk [vmem:[#allocation4] sm:$0x3] %vm222, 0.0
          %226 = vst.msk [vmem:[#allocation5] sm:$0x3] %vm222, 0.0
          %s227 = scalar_lea.smem [#allocation11], 0
          %228 = sst [smem:[%s227]] 0.0
        $region44: #{tpu_custom_call.1} parent=31 // pred_fallthru
          _
        %v229 = vld [vmem:[%s184] sm:$0xf]
        %v230 = vld [vmem:[%s184 + $0x4] sm:$0xf]
        %v231 = vld [vmem:[%s194] sm:$0x1]
        %v232 = vld [vmem:[%s194 + $0x1] sm:$0x1]
        %vm233 = vcmask 1043456
        %v234 = vsel %vm233, %v229, -inf
        %v235 = vrot.slane %v234, 4
        %v236 = vmax.f32 %v234, %v235
        %v237 = vrot.slane %v236, 2
        %v238 = vmax.f32 %v236, %v237
        %v239 = vrot.slane %v238, 1
        %v240 = vmax.f32 %v238, %v239
        %v241 = vsel %vm233, %v230, -inf
        %v242 = vrot.slane %v241, 4
        %v243 = vmax.f32 %v241, %v242
        %v244 = vrot.slane %v243, 2
        %v245 = vmax.f32 %v243, %v244
        %v246 = vrot.slane %v245, 1
        %v247 = vmax.f32 %v245, %v246
        %v248 = vsub.f32 %v229, %v240
        %v249 = vsub.f32 %v230, %v247
        %v250 = vmul.f32 %v248, 1.442695
        %v251 = vpow.pop %v250
        %v252 = vmul.f32 %v249, 1.442695
        %v253 = vpow.pop %v252
        %v254 = vsel %vm233, %v251, 0.0
        %v255 = vrot.slane %v254, 4
        %v256 = vadd.f32 %v254, %v255
        %v257 = vrot.slane %v256, 2
        %v258 = vadd.f32 %v256, %v257
        %v259 = vrot.slane %v258, 1
        %v260 = vadd.f32 %v258, %v259
        %v261 = vsel %vm233, %v253, 0.0
        %v262 = vrot.slane %v261, 4
        %v263 = vadd.f32 %v261, %v262
        %v264 = vrot.slane %v263, 2
        %v265 = vadd.f32 %v263, %v264
        %v266 = vrot.slane %v265, 1
        %v267 = vadd.f32 %v265, %v266
        %v268 = vrcp.pop %v260
        %v269 = vrcp.pop %v267
        %v270 = vmul.f32 %v251, %v268
        %v271 = vmul.f32 %v253, %v269
        %v272 = vlog2.pop %v260
        %v273 = vmul.f32 %v272, 0.6931472
        %v274 = vlog2.pop %v267
        %v275 = vmul.f32 %v274, 0.6931472
        %v276 = vlaneseq
        %v277 = vshrl.u32 %v276, 7
        %v278 = vperm.slane %v231, 0
        %v279 = vperm.slane %v232, 0
        %vm280 = vcmp.eq.s32.totalorder %v277, %v278
        %vm281 = vcmp.eq.s32.totalorder %v277, %v279
        %v282 = vsel %vm280, 1, 0
        %v283 = vsel %vm281, 1, 0
        %v284 = vcvt.s32.f32 %v282
        %v285 = vcvt.s32.f32 %v283
        %v286 = vld [vmem:[#allocation2] sm:$0x3]
        %v287 = vmul.f32 %v270, %v284
        %v288 = vmul.f32 %v271, %v285
        %v289 = vsel %vm233, %v287, 0.0
        %290 = vadd.xlane.f32.xlu0 %v289
        %v291 = vpop.xlane.xlu0 %290
        %v292 = vsel %vm233, %v288, 0.0
        %293 = vadd.xlane.f32.xlu0 %v292
        %v294 = vpop.xlane.xlu0 %293
        %v297 = vlaneseq
        %v298 = vand.u32 %v297, 127
        %v299 = vperm.slane %v291, %v298
        %v300 = vperm.slane %v294, %v298
        %vm301 = vcmask 1041409
        %v302 = vsel %vm301, %v300, %v299
        %v304 = vadd.f32 %v286, %v302
        %vm305 = vcmask 25600
        %306 = vst.msk [vmem:[#allocation2] sm:$0x3] %vm305, %v304
        %v307 = vld [vmem:[#allocation3] sm:$0x3]
        %v308 = vsel %vm233, %v270, 0.0
        %309 = vadd.xlane.f32.xlu0 %v308
        %v310 = vpop.xlane.xlu0 %309
        %v311 = vsel %vm233, %v271, 0.0
        %312 = vadd.xlane.f32.xlu0 %v311
        %v313 = vpop.xlane.xlu0 %312
        %v316 = vperm.slane %v310, %v298
        %v317 = vperm.slane %v313, %v298
        %v318 = vsel %vm301, %v317, %v316
        %v320 = vadd.f32 %v307, %v318
        %321 = vst.msk [vmem:[#allocation3] sm:$0x3] %vm305, %v320
        %v322 = vld [vmem:[#allocation4] sm:$0x3]
        %v323 = vsel %vm233, %v284, 0.0
        %324 = vadd.xlane.f32.xlu0 %v323
        %v325 = vpop.xlane.xlu0 %324
        %v326 = vsel %vm233, %v285, 0.0
        %327 = vadd.xlane.f32.xlu0 %v326
        %v328 = vpop.xlane.xlu0 %327
        %v331 = vperm.slane %v325, %v298
        %v332 = vperm.slane %v328, %v298
        %v333 = vsel %vm301, %v332, %v331
        %v335 = vadd.f32 %v322, %v333
        %336 = vst.msk [vmem:[#allocation4] sm:$0x3] %vm305, %v335
        %v337 = vld [vmem:[#allocation5] sm:$0x3]
        %v338 = vsub.f32 %v273, %v248
        %v339 = vsub.f32 %v275, %v249
        %v340 = vmul.f32 %v284, %v338
        %v341 = vmul.f32 %v285, %v339
        %v342 = vsel %vm233, %v340, 0.0
        %343 = vadd.xlane.f32.xlu0 %v342
        %v344 = vpop.xlane.xlu0 %343
        %v345 = vsel %vm233, %v341, 0.0
        %346 = vadd.xlane.f32.xlu0 %v345
        %v347 = vpop.xlane.xlu0 %346
        %v350 = vperm.slane %v344, %v298
        %v351 = vperm.slane %v347, %v298
        %v352 = vsel %vm301, %v351, %v350
        %v354 = vadd.f32 %v337, %v352
        %355 = vst.msk [vmem:[#allocation5] sm:$0x3] %vm305, %v354
        %p356 = scmp.eq.s32.totalorder %s21, 1
        // Predicated region
        $region45: #{tpu_custom_call.1} parent=31 // pred_check
          %p357 = pneg %p356
        $region46: #{tpu_custom_call.1} parent=31 // pred_check_branch
          %359 = sbr.rel (%p357) target = $region48
        $region47: #{tpu_custom_call.1} parent=31 // pred_region
          %v360 = vld [vmem:[%s2] sm:$0x1]
          %v361 = vld [vmem:[#allocation2] sm:$0x3]
          %v362 = vld [vmem:[#allocation3] sm:$0x3]
          %v363 = vld [vmem:[#allocation4] sm:$0x3]
          %v364 = vadd.f32 %v362, %v363
          %v365 = vmul.f32 %v361, 2.0
          %v366 = vadd.f32 %v364, 1e-06
          %v367 = vrcp.pop %v366
          %v368 = vmul.f32 %v366, %v367
          %v369 = vsub.f32 1.0, %v368
          %v370 = vmul.f32 %v367, %v369
          %v371 = vadd.f32 %v367, %v370
          %vm372 = vweird.f32 %v366
          %vm373 = vweird.f32 %v367
          %vm374 = vmor %vm372, %vm373
          %v375 = vsel %vm374, %v367, %v371
          %v376 = vand.u32 2147483647, %v366
          %vm377 = vcmp.eq.f32.partialorder %v376, 8.507059e+37
          %v378 = vand.u32 %v366, 2147483648
          %v379 = vor.u32 1.1754944e-38, %v378
          %v380 = vsel %vm377, %v379, %v375
          %v381 = vmul.f32 %v365, %v380
          %v383 = vperm.slane %v360, 0
          %v385 = vmul.f32 %v381, %v383
          %v386 = vsel %vm305, %v385, 0.0
          %387 = vadd.xlane.f32.xlu0 %v386
          %v388 = vpop.xlane.xlu0 %387
          %v389 = vsub.f32 1.0, %v388
          %vm390 = vcmask 1024
          %v391 = vsel %vm390, %v389, 0.0
          %392 = vadd.xlane.f32.xlu0 %v391
          %v393 = vpop.xlane.xlu0 %392
          %v394 = vrot.slane %v393, 4
          %v395 = vadd.f32 %v393, %v394
          %v396 = vrot.slane %v395, 2
          %v397 = vadd.f32 %v395, %v396
          %v398 = vrot.slane %v397, 1
          %v399 = vadd.f32 %v397, %v398
          %s400 = vtos %v399
          %v401 = vrcp.pop 2.0
          %v402 = vmul.f32 2.0, %v401
          %v403 = vsub.f32 1.0, %v402
          %v404 = vmul.f32 %v401, %v403
          %v405 = vadd.f32 %v401, %v404
          %vm406 = vweird.f32 %v401
          %v407 = vsel %vm406, %v401, %v405
          %s408 = vtos %v407
          %s409 = smul.f32 %s400, %s408
          %v410 = vld [vmem:[#allocation5] sm:$0x3]
          %v411 = vmul.f32 %v410, %v383
          %v412 = vsel %vm305, %v411, 0.0
          %413 = vadd.xlane.f32.xlu0 %v412
          %v414 = vpop.xlane.xlu0 %413
          %v415 = vrot.slane %v414, 4
          %v416 = vadd.f32 %v414, %v415
          %v417 = vrot.slane %v416, 2
          %v418 = vadd.f32 %v416, %v417
          %v419 = vrot.slane %v418, 1
          %v420 = vadd.f32 %v418, %v419
          %s421 = vtos %v420
          %v422 = vmul.f32 %v363, %v383
          %v423 = vsel %vm305, %v422, 0.0
          %424 = vadd.xlane.f32.xlu0 %v423
          %v425 = vpop.xlane.xlu0 %424
          %v426 = vrot.slane %v425, 4
          %v427 = vadd.f32 %v425, %v426
          %v428 = vrot.slane %v427, 2
          %v429 = vadd.f32 %v427, %v428
          %v430 = vrot.slane %v429, 1
          %v431 = vadd.f32 %v429, %v430
          %s432 = vtos %v431
          %v433 = vstv %s432
          %v434 = vrcp.pop %v433
          %v435 = vmul.f32 %v433, %v434
          %v436 = vsub.f32 1.0, %v435
          %v437 = vmul.f32 %v434, %v436
          %v438 = vadd.f32 %v434, %v437
          %vm439 = vweird.f32 %v433
          %vm440 = vweird.f32 %v434
          %vm441 = vmor %vm439, %vm440
          %v442 = vsel %vm441, %v434, %v438
          %v443 = vand.u32 2147483647, %v433
          %vm444 = vcmp.eq.f32.partialorder %v443, 8.507059e+37
          %v445 = vand.u32 %v433, 2147483648
          %v446 = vor.u32 1.1754944e-38, %v445
          %v447 = vsel %vm444, %v446, %v442
          %s448 = vtos %v447
          %s449 = smul.f32 %s421, %s448
          %s450 = sadd.f32 %s409, %s449
          %s451 = scalar_lea.smem [#allocation11], 0
          %452 = sst [smem:[%s451]] %s450
        $region48: #{tpu_custom_call.1} parent=31 // pred_fallthru
          _
        // Predicated region
        $region49: #{tpu_custom_call.1} parent=31 // pred_check
          %p453 = pneg %p107
        $region50: #{tpu_custom_call.1} parent=31 // pred_check_branch
          %455 = sbr.rel (%p453) target = $region52
        $region51: #{tpu_custom_call.1} parent=31 // pred_region
          %457 = vsyncadd [#allocation8], 0
          %s459 = sshll.u32 %s3, 4
          %s460 = int_to_ptr.hbm [resolvable:$true] %s459
          %462 = dma.smem_to_hbm [#allocation11], 16, %s460, [#allocation8]
        $region52: #{tpu_custom_call.1} parent=31 // pred_fallthru
          _
        // Predicated region
        $region53: #{tpu_custom_call.1} parent=31 // pred_check
          %p463 = pneg %p107
        $region54: #{tpu_custom_call.1} parent=31 // pred_check_branch
          %465 = sbr.rel (%p463) target = $region56
        $region55: #{tpu_custom_call.1} parent=31 // pred_region
          %467 = dma.done [#allocation8], 16
        $region56: #{tpu_custom_call.1} parent=31 // pred_fallthru
          _
        %468 = sfence
      $region32: #{tpu_custom_call.1} parent=5 // pred_fallthru
        _
      %p469 = scmp.le.s32.totalorder 2, %s16
      // Predicated region
      $region57: #{tpu_custom_call.1} parent=5 // pred_check
        %p470 = pneg %p469
      $region58: #{tpu_custom_call.1} parent=5 // pred_check_branch
        %472 = sbr.rel (%p470) target = $region60
      $region59: #{tpu_custom_call.1} parent=5 // pred_region
        %s473 = ssub.s32 %s16, 2
      $region60: #{tpu_custom_call.1} parent=5 // pred_fallthru
        _
    $region6: #{tpu_custom_call.1} parent=1 // loop_footer
      %s20 = sadd.s32 1, %s16
    $region7: #{tpu_custom_call.1} parent=1 // loop_footer_branch
      %15 = sbr.rel target = $region3
    $region8: #{tpu_custom_call.1} parent=1 // loop_exit
      _
    %474 = vsyncpa [#allocation7], 1
    %s475 = scalar_lea.sflag [#allocation7], 1
    %476 = vsyncpa %s475, 1
    %477 = vsyncpa [#allocation10], 1
    %s478 = scalar_lea.sflag [#allocation10], 1
    %479 = vsyncpa %s478, 1
    %480 = vsyncpa [#allocation8], 1
    %s481 = scalar_lea.sflag [#allocation8], 1
    %482 = vsyncpa %s481, 1

</llo_original>
